<compile_context>
chip_gen: v5e
topology: v5e:2x2
jax: 0.10.0
libtpu: 0.0.40
codegen_flags: <defaults>
</compile_context>

<pallas_src>
import math

import jax
import jax.numpy as jnp
from jax.experimental import pallas as pl
from jax.experimental.pallas import tpu as pltpu

_C = math.sqrt(2.0 / math.pi)
_K = _C * 0.044715  # folded constant: C * 0.044715


def _gelu_tanh_math(x):
    # Python-float constants are weakly typed, so the compute stays in x.dtype.
    inner = x * (_C + _K * (x * x))          # == C * (x + 0.044715 * x^3)
    return 0.5 * x * (1.0 + jnp.tanh(inner))  # tanh -> EUP slot (near-free)


def _make_kernel(compute_dtype):
    def kernel(x_ref, o_ref):
        x = x_ref[...].astype(compute_dtype)
        o_ref[...] = _gelu_tanh_math(x).astype(o_ref.dtype)
    return kernel


def _tpu_config():
    """Per-generation tile/compute policy. Conservative defaults if unknown."""
    kind = ""
    try:
        kind = (jax.devices()[0].device_kind or "").lower()
    except Exception:
        pass

    block_bytes = 2 * 1024 * 1024   # safe everywhere (8 MiB double-buffered footprint)
    vmem_limit = None
    multi_core = False              # v7x has 2 TensorCores per chip
    bf16_native = False             # compute bf16 natively (needs bf16 VALU/EUP)

    if "v7" in kind:
        block_bytes = 6 * 1024 * 1024        # 24 MiB footprint; amortize step overhead
        vmem_limit = 48 * 1024 * 1024        # physical 64 MiB/TC; leave headroom
        multi_core = True
        bf16_native = True
    elif "v6" in kind:
        block_bytes = 4 * 1024 * 1024        # 16 MiB footprint < 32 MiB scoped default
        bf16_native = True
    # v5e and unknown chips: keep defaults (2 MiB blocks, f32 compute).

    # Sanity-cap against actual VMEM capacity if queryable: keep the
    # double-buffered in+out footprint (~4x block bytes) under half of VMEM.
    try:
        cap = int(pltpu.get_tpu_info().vmem_capacity_bytes)
        block_bytes = min(block_bytes, cap // 8)
        if vmem_limit is not None:
            vmem_limit = min(vmem_limit, cap - (8 << 20))
    except Exception:
        pass

    return block_bytes, vmem_limit, multi_core, bf16_native


def _choose_lane(n):
    """Widest lane width (multiple of 128) dividing n, preferring >= 8 rows."""
    divisors = [c for c in (1024, 512, 256, 128) if n % c == 0]
    for c in divisors:
        if n // c >= 8:
            return c
    return divisors[0]


def _choose_block_rows(rows, lane, itemsize, block_bytes, multi_core):
    """Block row count + grid size; balanced blocks on multi-TC chips."""
    sub = max(8, 32 // itemsize)                    # sublane multiple for this dtype
    target_br = max(sub, block_bytes // (lane * itemsize))

    if rows <= target_br:
        if multi_core and rows >= 64:
            # v7x megacore: give both TensorCores a (near-)equal block.
            br = -(-pl.cdiv(rows, 2) // sub) * sub
            return br, pl.cdiv(rows, br)
        return rows, 1                              # single full-extent block

    br = (target_br // sub) * sub
    grid = pl.cdiv(rows, br)
    if multi_core and grid % 2 == 1:
        # Prefer an even count of near-equal blocks so the 2 TCs stay balanced.
        br_even = -(-pl.cdiv(rows, grid + 1) // sub) * sub
        if br_even >= sub:
            br, grid = br_even, pl.cdiv(rows, br_even)
    return br, grid


@jax.jit
def new_gelu(x):
    orig_shape, orig_dtype = x.shape, x.dtype
    n = x.size
    if n == 0:
        return x
    itemsize = jnp.dtype(orig_dtype).itemsize

    block_bytes, vmem_limit, multi_core, bf16_native = _tpu_config()
    compute_dtype = (orig_dtype if (bf16_native and orig_dtype == jnp.bfloat16)
                     else jnp.float32)

    xf = jnp.reshape(x, (-1,))
    n_main = (n // 128) * 128

    if n_main == 0:
        # Fewer than 128 elements: plain XLA, a kernel launch isn't worth it.
        y = _gelu_tanh_math(xf.astype(compute_dtype)).astype(orig_dtype)
        return jnp.reshape(y, orig_shape)

    lane = _choose_lane(n_main)
    rows = n_main // lane
    x2 = jnp.reshape(xf[:n_main], (rows, lane))

    br, grid = _choose_block_rows(rows, lane, itemsize, block_bytes, multi_core)

    cp_kwargs = dict(dimension_semantics=("parallel",))
    if vmem_limit is not None:
        cp_kwargs["vmem_limit_bytes"] = int(vmem_limit)

    out_main = pl.pallas_call(
        _make_kernel(compute_dtype),
        out_shape=jax.ShapeDtypeStruct((rows, lane), orig_dtype),
        grid_spec=pltpu.PrefetchScalarGridSpec(
            num_scalar_prefetch=0,
            grid=(grid,),
            in_specs=[pl.BlockSpec((br, lane), lambda i: (i, 0))],
            out_specs=pl.BlockSpec((br, lane), lambda i: (i, 0)),
        ),
        compiler_params=pltpu.CompilerParams(**cp_kwargs),
        cost_estimate=pl.CostEstimate(
            flops=8 * rows * lane,
            transcendentals=rows * lane,
            bytes_accessed=2 * rows * lane * itemsize,
        ),
    )(x2)

    if n_main == n:
        return jnp.reshape(out_main, orig_shape)

    # Non-128-divisible tail (< 128 elems): plain XLA + stitch. Avoids the
    # full-tensor pad + slice round-trip through HBM.
    tail = xf[n_main:]
    out_tail = _gelu_tanh_math(tail.astype(compute_dtype)).astype(orig_dtype)
    out = jnp.concatenate([jnp.reshape(out_main, (-1,)), out_tail])
    return jnp.reshape(out, orig_shape)


def _ref_new_gelu(x):
    xf = x.astype(jnp.float32)
    y = 0.5 * xf * (1.0 + jnp.tanh(_C * (xf + 0.044715 * xf ** 3)))
    return y.astype(x.dtype)


if __name__ == "__main__":
    key = jax.random.PRNGKey(0)
    x = jax.random.normal(key, (2, 4, 16, 16), dtype=jnp.float32)

    y = jax.block_until_ready(new_gelu(x))
    y_ref = _ref_new_gelu(x)
    assert y.shape == x.shape and y.dtype == x.dtype
    assert jnp.max(jnp.abs(y - y_ref)) < 1e-5, "mismatch vs reference (small f32)"

    # Larger padding-free shape: exercises the multi-block grid path.
    x_big = jax.random.normal(jax.random.PRNGKey(1), (8, 512, 1024), dtype=jnp.float32)
    y_big = jax.block_until_ready(new_gelu(x_big))
    assert jnp.max(jnp.abs(y_big - _ref_new_gelu(x_big))) < 1e-5, "mismatch (big f32)"

    # bf16 input: native bf16 compute on v6e/v7x, f32 compute on v5e.
    x_bf = jax.random.normal(jax.random.PRNGKey(2), (4, 256, 512)).astype(jnp.bfloat16)
    y_bf = jax.block_until_ready(new_gelu(x_bf))
    ref_bf = _ref_new_gelu(x_bf)
    assert y_bf.dtype == jnp.bfloat16
    assert jnp.max(jnp.abs(y_bf.astype(jnp.float32)
                           - ref_bf.astype(jnp.float32))) < 8e-2, "mismatch (bf16)"

    # Non-128-divisible element count: prefix kernel + XLA tail (no pad path).
    x_odd = jax.random.normal(jax.random.PRNGKey(3), (7, 37), dtype=jnp.float32)
    y_odd = jax.block_until_ready(new_gelu(x_odd))
    assert jnp.max(jnp.abs(y_odd - _ref_new_gelu(x_odd))) < 1e-5, "mismatch (odd shape)"

    print("KERNEL_OK")
</pallas_src>

<mosaic_0001>
module attributes {stable_mosaic.version = 11 : i64} {
  func.func @kernel(%arg0: i32, %arg1: memref<8x256xf32, #tpu.memory_space<vmem>>, %arg2: memref<8x256xf32, #tpu.memory_space<vmem>>) attributes {dimension_semantics = [#tpu.dimension_semantics<parallel>], iteration_bounds = array<i64: 1>, scalar_prefetch = 0 : i64, scratch_operands = 0 : i64, tpu.core_type = #tpu.core_type<tc>, window_params = [{transform_indices = @transform_0, window_bounds = array<i64: 8, 256>}, {transform_indices = @transform_1, window_bounds = array<i64: 8, 256>}]} {
    %c0 = arith.constant 0 : index
    %c0_0 = arith.constant 0 : index
    %0 = vector.load %arg1[%c0, %c0_0] : memref<8x256xf32, #tpu.memory_space<vmem>>, vector<8x256xf32>
    %1 = arith.mulf %0, %0 : vector<8x256xf32>
    %cst = arith.constant 0.0356774069 : f32
    %2 = vector.broadcast %cst : f32 to vector<8x256xf32>
    %3 = arith.mulf %2, %1 : vector<8x256xf32>
    %cst_1 = arith.constant 0.797884583 : f32
    %4 = vector.broadcast %cst_1 : f32 to vector<8x256xf32>
    %5 = arith.addf %4, %3 : vector<8x256xf32>
    %6 = arith.mulf %0, %5 : vector<8x256xf32>
    %cst_2 = arith.constant 5.000000e-01 : f32
    %7 = vector.broadcast %cst_2 : f32 to vector<8x256xf32>
    %8 = arith.mulf %7, %0 : vector<8x256xf32>
    %9 = math.tanh %6 : vector<8x256xf32>
    %cst_3 = arith.constant 1.000000e+00 : f32
    %10 = vector.broadcast %cst_3 : f32 to vector<8x256xf32>
    %11 = arith.addf %10, %9 : vector<8x256xf32>
    %12 = arith.mulf %8, %11 : vector<8x256xf32>
    %c0_4 = arith.constant 0 : index
    %c0_5 = arith.constant 0 : index
    %13 = vector.load %arg2[%c0_4, %c0_5] : memref<8x256xf32, #tpu.memory_space<vmem>>, vector<8x256xf32>
    tpu.vector_store %arg2[%c0_4, %c0_5], %12 {strides = array<i32>} : memref<8x256xf32, #tpu.memory_space<vmem>>, vector<8x256xf32>,
    return
  }
  func.func @transform_0(%arg0: i32) -> (i32, i32) {
    %c0_i32 = arith.constant 0 : i32
    %c0_i32_0 = arith.constant 0 : i32
    return %arg0, %c0_i32 : i32, i32
  }
  func.func @transform_1(%arg0: i32) -> (i32, i32) {
    %c0_i32 = arith.constant 0 : i32
    %c0_i32_0 = arith.constant 0 : i32
    return %arg0, %c0_i32 : i32, i32
  }
}

</mosaic_0001>

<llo_original>
// kernel: new_gelu.1
$region0: #{new_gelu.1}
  #allocation0 [shape = 'u32[]', space=smem, size = 0x4, offset = 0x4, fixed_abs, tag = 'smem constant byte address 0x4 - core index']
  #allocation1 [shape = 'u32[72,128]{1,0:T(1,128)}', space=vmem, size = 0x9000, scoped, tag = 'internal scratch']
  %s0 = inlined_call_operand.vmem [shape: f32[8,256], index: 0, kind: input, shape index: {}]
  %s1 = inlined_call_operand.vmem [shape: f32[8,256], index: 1, kind: output, shape index: {}]
  %s2 = sld [smem:[#allocation0]]
  $region14: #{new_gelu.1} parent=0
    _
  %s4 = ssub.s32 1, %s2
  %s5 = scalar_select 0, %s4, %s2
  // Predicated region
  $region2: #{new_gelu.1} parent=0 // pred_check
    _
  $region3: #{new_gelu.1} parent=0 // pred_check_branch
    %7 = sbr.rel (0) target = $region5
  $region4: #{new_gelu.1} parent=0 // pred_region
    _
  $region5: #{new_gelu.1} parent=0 // pred_fallthru
    _
  %v8 = vld [vmem:[%s0] sm:$0xff]
  %v9 = vld [vmem:[%s0 + $0x8] sm:$0xff]
  %v10 = vmul.f32 %v8, %v8
  %v11 = vmul.f32 %v9, %v9
  %v12 = vmul.f32 %v10, 0.035677407
  %v13 = vmul.f32 %v11, 0.035677407
  %v14 = vadd.f32 %v12, 0.7978846
  %v15 = vadd.f32 %v13, 0.7978846
  %v16 = vmul.f32 %v8, %v14
  %v17 = vmul.f32 %v9, %v15
  %v18 = vmul.f32 %v8, 0.5
  %v19 = vmul.f32 %v9, 0.5
  %v20 = vtanh.pop %v16
  %v21 = vtanh.pop %v17
  %v22 = vadd.f32 %v20, 1.0
  %v23 = vadd.f32 %v21, 1.0
  %v24 = vmul.f32 %v18, %v22
  %v25 = vmul.f32 %v19, %v23
  %26 = vst [vmem:[%s1] sm:$0xff] %v24
  %27 = vst [vmem:[%s1 + $0x8] sm:$0xff] %v25
  // Predicated region
  $region6: #{new_gelu.1} parent=0 // pred_check
    _
  $region7: #{new_gelu.1} parent=0 // pred_check_branch
    %29 = sbr.rel (0) target = $region9
  $region8: #{new_gelu.1} parent=0 // pred_region
    _
  $region9: #{new_gelu.1} parent=0 // pred_fallthru
    _
  // Predicated region
  $region10: #{new_gelu.1} parent=0 // pred_check
    _
  $region11: #{new_gelu.1} parent=0 // pred_check_branch
    %31 = sbr.rel (0) target = $region13
  $region12: #{new_gelu.1} parent=0 // pred_region
    _
  $region13: #{new_gelu.1} parent=0 // pred_fallthru
    _

</llo_original>
